<compile_context>
chip_gen: v5e
topology: v5e:2x2
jax: 0.10.0
libtpu: 0.0.40
codegen_flags: <defaults>
</compile_context>

<pallas_src>
import numpy as np
import jax
import jax.numpy as jnp
from jax.experimental import pallas as pl
from jax.experimental.pallas import tpu as pltpu

# Model hyper-parameters implied by the module:
#   merge_critic expects 1664 = 4*F + 2*F*S + F*A  ->  F=64, S=8, A=6
FEATURE_NUM = 64
SEQ_LEN = 8
A_DIM = 6
N_CHANNELS = 7
BATCH = 2
MERGE_K = 4 * FEATURE_NUM + 2 * FEATURE_NUM * SEQ_LEN + FEATURE_NUM * A_DIM  # 1664
F_PAD = 128          # merge output dim padded 64 -> 128 for lane-dense vregs


def critic_kernel(xg_ref, c_ref, w2_ref, out_ref):
    """Single fused forward pass.

    xg_ref : [TB, 1664] f32   per-merge-column scalar input (statically gathered)
    c_ref  : [3, 1664]  f32   row 0 = split weights, row 1 = split biases,
                              row 2 = [merge_b(128 pad) | val_w(128 pad) | val_b | 0...]
    w2_ref : [1664, 128] bf16 merge weight (transposed, output dim zero-padded)
    out_ref: [TB, 1]    f32
    """
    xg = xg_ref[...]

    # All 7 split layers (+ channel / last-timestep selection) as one VPU FMA (f32).
    h = jnp.maximum(xg * c_ref[0:1, :] + c_ref[1:2, :], 0.0)          # [TB, 1664]

    # Single K=1664 merge matmul: bf16 MXU operands, f32 accumulation.
    m = jnp.dot(h.astype(jnp.bfloat16), w2_ref[...],
                preferred_element_type=jnp.float32) + c_ref[2:3, 0:F_PAD]
    vn = jnp.maximum(m, 0.0)                                          # [TB, 128]

    # Value head: VPU multiply + XLU row reduction (padded lanes are zero).
    v = jnp.sum(vn * c_ref[2:3, F_PAD:2 * F_PAD], axis=-1, keepdims=True)
    out_ref[...] = v + c_ref[2:3, 2 * F_PAD:2 * F_PAD + 1]


def init_raw_params(key, feature_num=FEATURE_NUM):
    """PyTorch-shaped parameters, deterministic init."""
    F = feature_num
    ks = jax.random.split(key, 20)
    sc = 0.1

    def n(k, shape):
        return jax.random.normal(k, shape, jnp.float32) * sc

    raw = {
        "fc1_w": n(ks[0], (F, 1)), "fc1_b": n(ks[1], (F,)),
        "fc2_w": n(ks[2], (F, 1)), "fc2_b": n(ks[3], (F,)),
        "conv3_w": n(ks[4], (F, 1, 1)), "conv3_b": n(ks[5], (F,)),
        "conv4_w": n(ks[6], (F, 1, 1)), "conv4_b": n(ks[7], (F,)),
        "conv5_w": n(ks[8], (F, 1, 1)), "conv5_b": n(ks[9], (F,)),
        "fc6_w": n(ks[10], (F, 1)), "fc6_b": n(ks[11], (F,)),
        "fc7_w": n(ks[12], (F, 1)), "fc7_b": n(ks[13], (F,)),
        "merge_w": n(ks[14], (F, 1664)), "merge_b": n(ks[15], (F,)),
        "val_w": n(ks[16], (1, F)), "val_b": n(ks[17], (1,)),
    }
    return raw


def make_selection(feature_num=FEATURE_NUM, seq_len=SEQ_LEN, a_dim=A_DIM):
    """Which flattened-input index (channel*S + timestep) feeds each merge column.

    Column ordering matches the PyTorch merge concat exactly:
      [split1(F), split2(F), split3(F*S, f-major), split4(F*S, f-major),
       split5(F*A, f-major), split6(F), split7(F)]  -> 1664 columns.
    Compile-time numpy constant -> the wrapper gather is fully static.
    """
    F, S, A = feature_num, seq_len, a_dim
    last = S - 1
    return np.concatenate([
        np.full(F, 0 * S + last),
        np.full(F, 1 * S + last),
        2 * S + np.tile(np.arange(S), F),
        3 * S + np.tile(np.arange(S), F),
        4 * S + np.tile(np.arange(A), F),
        np.full(F, 5 * S + last),
        np.full(F, 6 * S + last),
    ]).astype(np.int32)


def pack_params(raw, feature_num=FEATURE_NUM, seq_len=SEQ_LEN, a_dim=A_DIM,
                f_pad=F_PAD):
    """Re-block PyTorch-shaped params into kernel-friendly fused tensors."""
    F, S, A = feature_num, seq_len, a_dim

    # Per-column scalar weight / bias of the split layer feeding that column.
    w_col = jnp.concatenate([
        raw["fc1_w"][:, 0],
        raw["fc2_w"][:, 0],
        jnp.repeat(raw["conv3_w"][:, 0, 0], S),
        jnp.repeat(raw["conv4_w"][:, 0, 0], S),
        jnp.repeat(raw["conv5_w"][:, 0, 0], A),
        raw["fc6_w"][:, 0],
        raw["fc7_w"][:, 0],
    ])
    b_col = jnp.concatenate([
        raw["fc1_b"], raw["fc2_b"],
        jnp.repeat(raw["conv3_b"], S),
        jnp.repeat(raw["conv4_b"], S),
        jnp.repeat(raw["conv5_b"], A),
        raw["fc6_b"], raw["fc7_b"],
    ])
    K = w_col.shape[0]                                   # 1664

    # One f32 constants slab: row0=w_col, row1=b_col,
    # row2 = [merge_b (padded to 128) | val_w (padded to 128) | val_b | zeros].
    consts = jnp.zeros((3, K), jnp.float32)
    consts = consts.at[0, :].set(w_col)
    consts = consts.at[1, :].set(b_col)
    consts = consts.at[2, 0:F].set(raw["merge_b"])
    consts = consts.at[2, f_pad:f_pad + F].set(raw["val_w"][0])
    consts = consts.at[2, 2 * f_pad].set(raw["val_b"][0])

    # Merge weight: [F_out, 1664] -> [1664, F_out], pad F_out 64 -> 128, bf16.
    w2 = (jnp.zeros((K, f_pad), jnp.float32)
          .at[:, :F].set(raw["merge_w"].T)
          .astype(jnp.bfloat16))

    return dict(sel=make_selection(feature_num, seq_len, a_dim),
                consts=consts, w2=w2)


def _pick_tb(batch):
    """Batch block size.

    For larger PPO batches give the grid >= 2 steps so the 'parallel' axis can
    shard across v7x's two TensorCores; keep blocks as large as that allows
    (VMEM is never the constraint here).  At tiny batches TB == B.
    """
    if batch < 16:
        return batch
    tb = -(-batch // 2)             # cdiv(batch, 2)
    tb = ((tb + 7) // 8) * 8        # sublane-aligned
    return min(tb, batch)


def critic_forward(x, packed):
    """x: [B, C, S] float32 (NCL, like PyTorch)."""
    B, C, S = x.shape
    x2d = x.reshape(B, C * S)              # metadata-only reshape
    xg = x2d[:, packed["sel"]]             # [B, 1664] static gather (sel is numpy)

    K = packed["consts"].shape[1]
    TB = _pick_tb(B)
    grid = (pl.cdiv(B, TB),)

    in_specs = [
        pl.BlockSpec((TB, K), lambda i: (i, 0)),
        pl.BlockSpec(packed["consts"].shape, lambda i: (0, 0)),
        pl.BlockSpec(packed["w2"].shape, lambda i: (0, 0)),
    ]
    out_spec = pl.BlockSpec((TB, 1), lambda i: (i, 0))

    return pl.pallas_call(
        critic_kernel,
        out_shape=jax.ShapeDtypeStruct((B, 1), jnp.float32),
        grid=grid,
        in_specs=in_specs,
        out_specs=out_spec,
        compiler_params=pltpu.CompilerParams(
            dimension_semantics=("parallel",)),
    )(xg, packed["consts"], packed["w2"])


def critic_reference(x, raw, a_dim=A_DIM):
    """Plain-JAX (f32) mirror of the PyTorch forward (for verification)."""
    B = x.shape[0]
    relu = jax.nn.relu

    def fc(col, w, b):          # col [B,1], w [F,1], b [F]
        return relu(col @ w.T + b)

    def conv1x1(seq, w, b):     # seq [B,L], w [F,1,1], b [F] -> [B,F,L]
        return seq[:, None, :] * w[:, 0, 0][None, :, None] + b[None, :, None]

    s1 = fc(x[:, 0:1, -1], raw["fc1_w"], raw["fc1_b"])
    s2 = fc(x[:, 1:2, -1], raw["fc2_w"], raw["fc2_b"])
    s3 = relu(conv1x1(x[:, 2, :], raw["conv3_w"], raw["conv3_b"])).reshape(B, -1)
    s4 = relu(conv1x1(x[:, 3, :], raw["conv4_w"], raw["conv4_b"])).reshape(B, -1)
    s5 = relu(conv1x1(x[:, 4, :a_dim], raw["conv5_w"], raw["conv5_b"])).reshape(B, -1)
    s6 = fc(x[:, 5:6, -1], raw["fc6_w"], raw["fc6_b"])
    s7 = fc(x[:, 6:7, -1], raw["fc7_w"], raw["fc7_b"])
    merge = jnp.concatenate([s1, s2, s3, s4, s5, s6, s7], axis=1)   # [B, 1664]
    value_net = relu(merge @ raw["merge_w"].T + raw["merge_b"])
    value = value_net @ raw["val_w"].T + raw["val_b"]
    return value


if __name__ == "__main__":
    key = jax.random.PRNGKey(0)
    k_x, k_p = jax.random.split(key)

    x = jax.random.normal(k_x, (BATCH, N_CHANNELS, SEQ_LEN), jnp.float32)

    raw = init_raw_params(k_p)
    packed = pack_params(raw)

    out = critic_forward(x, packed)
    out = jax.block_until_ready(out)

    ref = critic_reference(x, raw)
    assert out.shape == (BATCH, 1), out.shape
    # Split layer and value head are exact f32; the only rounding source is the
    # bf16-operand K=1664 merge matmul (f32 accumulation), hence 2e-3.
    assert jnp.allclose(out, ref, atol=2e-3, rtol=2e-3), (out, ref)

    print("KERNEL_OK")
</pallas_src>

<mosaic_0001>
module attributes {stable_mosaic.version = 11 : i64} {
  func.func @critic_kernel(%arg0: i32, %arg1: memref<2x1664xf32, #tpu.memory_space<vmem>>, %arg2: memref<3x1664xf32, #tpu.memory_space<vmem>>, %arg3: memref<1664x128xbf16, #tpu.memory_space<vmem>>, %arg4: memref<2x1xf32, #tpu.memory_space<vmem>>) attributes {dimension_semantics = [#tpu.dimension_semantics<parallel>], iteration_bounds = array<i64: 1>, scalar_prefetch = 0 : i64, scratch_operands = 0 : i64, tpu.core_type = #tpu.core_type<tc>, window_params = [{transform_indices = @transform_0, window_bounds = array<i64: 2, 1664>}, {pipeline_mode = #tpu.pipeline_mode<synchronous>, transform_indices = @transform_1, window_bounds = array<i64: 3, 1664>}, {pipeline_mode = #tpu.pipeline_mode<synchronous>, transform_indices = @transform_2, window_bounds = array<i64: 1664, 128>}, {transform_indices = @transform_3, window_bounds = array<i64: 2, 1>}]} {
    %c0 = arith.constant 0 : index
    %c0_0 = arith.constant 0 : index
    %0 = vector.load %arg1[%c0, %c0_0] : memref<2x1664xf32, #tpu.memory_space<vmem>>, vector<2x1664xf32>
    %c0_1 = arith.constant 0 : index
    %c0_2 = arith.constant 0 : index
    %1 = vector.load %arg2[%c0_1, %c0_2] : memref<3x1664xf32, #tpu.memory_space<vmem>>, vector<1x1664xf32>
    %2 = vector.broadcast %1 : vector<1x1664xf32> to vector<2x1664xf32>
    %3 = arith.mulf %0, %2 : vector<2x1664xf32>
    %c1 = arith.constant 1 : index
    %c0_3 = arith.constant 0 : index
    %4 = vector.load %arg2[%c1, %c0_3] : memref<3x1664xf32, #tpu.memory_space<vmem>>, vector<1x1664xf32>
    %5 = vector.broadcast %4 : vector<1x1664xf32> to vector<2x1664xf32>
    %6 = arith.addf %3, %5 : vector<2x1664xf32>
    %cst = arith.constant 0.000000e+00 : f32
    %7 = vector.broadcast %cst : f32 to vector<2x1664xf32>
    %8 = arith.maximumf %6, %7 : vector<2x1664xf32>
    %9 = arith.truncf %8 : vector<2x1664xf32> to vector<2x1664xbf16>
    %c0_4 = arith.constant 0 : index
    %c0_5 = arith.constant 0 : index
    %10 = vector.load %arg3[%c0_4, %c0_5] : memref<1664x128xbf16, #tpu.memory_space<vmem>>, vector<1664x128xbf16>
    %cst_6 = arith.constant dense<0.000000e+00> : vector<2x128xf32>
    %11 = tpu.matmul %9, %10, %cst_6 {dimension_numbers = #tpu.dot_dimension_numbers<[1], [0], [0], [1], [0, 0, 1, 1], [], []>} : vector<2x1664xbf16>, vector<1664x128xbf16>, vector<2x128xf32> -> vector<2x128xf32>
    %c2 = arith.constant 2 : index
    %c0_7 = arith.constant 0 : index
    %12 = vector.load %arg2[%c2, %c0_7] : memref<3x1664xf32, #tpu.memory_space<vmem>>, vector<1x128xf32>
    %13 = vector.broadcast %12 : vector<1x128xf32> to vector<2x128xf32>
    %14 = arith.addf %11, %13 : vector<2x128xf32>
    %cst_8 = arith.constant 0.000000e+00 : f32
    %15 = vector.broadcast %cst_8 : f32 to vector<2x128xf32>
    %16 = arith.maximumf %14, %15 : vector<2x128xf32>
    %c2_9 = arith.constant 2 : index
    %c128 = arith.constant 128 : index
    %17 = vector.load %arg2[%c2_9, %c128] : memref<3x1664xf32, #tpu.memory_space<vmem>>, vector<1x128xf32>
    %18 = vector.broadcast %17 : vector<1x128xf32> to vector<2x128xf32>
    %19 = arith.mulf %16, %18 : vector<2x128xf32>
    %cst_10 = arith.constant dense<0.000000e+00> : vector<2xf32>
    %20 = vector.multi_reduction <add>, %19, %cst_10 [1] : vector<2x128xf32> to vector<2xf32>
    %21 = vector.shape_cast %20 : vector<2xf32> to vector<2x1xf32>
    %c2_11 = arith.constant 2 : index
    %c256 = arith.constant 256 : index
    %22 = vector.load %arg2[%c2_11, %c256] : memref<3x1664xf32, #tpu.memory_space<vmem>>, vector<1x1xf32>
    %23 = vector.broadcast %22 : vector<1x1xf32> to vector<2x1xf32>
    %24 = arith.addf %21, %23 : vector<2x1xf32>
    %c0_12 = arith.constant 0 : index
    %c0_13 = arith.constant 0 : index
    %25 = vector.load %arg4[%c0_12, %c0_13] : memref<2x1xf32, #tpu.memory_space<vmem>>, vector<2x1xf32>
    tpu.vector_store %arg4[%c0_12, %c0_13], %24 {strides = array<i32>} : memref<2x1xf32, #tpu.memory_space<vmem>>, vector<2x1xf32>,
    return
  }
  func.func @transform_0(%arg0: i32) -> (i32, i32) {
    %c0_i32 = arith.constant 0 : i32
    %c0_i32_0 = arith.constant 0 : i32
    return %arg0, %c0_i32 : i32, i32
  }
  func.func @transform_1(%arg0: i32) -> (i32, i32) {
    %c0_i32 = arith.constant 0 : i32
    %c0_i32_0 = arith.constant 0 : i32
    %c0_i32_1 = arith.constant 0 : i32
    return %c0_i32, %c0_i32_0 : i32, i32
  }
  func.func @transform_2(%arg0: i32) -> (i32, i32) {
    %c0_i32 = arith.constant 0 : i32
    %c0_i32_0 = arith.constant 0 : i32
    %c0_i32_1 = arith.constant 0 : i32
    return %c0_i32, %c0_i32_0 : i32, i32
  }
  func.func @transform_3(%arg0: i32) -> (i32, i32) {
    %c0_i32 = arith.constant 0 : i32
    %c0_i32_0 = arith.constant 0 : i32
    return %arg0, %c0_i32 : i32, i32
  }
}

</mosaic_0001>

<llo_original>
// kernel: tpu_custom_call.1
$region0: #{tpu_custom_call.1}
  #allocation0 [shape = 'u32[]', space=smem, size = 0x4, offset = 0x4, fixed_abs, tag = 'smem constant byte address 0x4 - core index']
  #allocation1 [shape = 'u32[72,128]{1,0:T(1,128)}', space=vmem, size = 0x9000, scoped, tag = 'internal scratch']
  %s0 = inlined_call_operand.hbm [shape: f32[2,1664], index: 0, kind: input, shape index: {}]
  %s1 = inlined_call_operand.hbm [shape: f32[3,1664], index: 1, kind: input, shape index: {}]
  %s2 = inlined_call_operand.hbm [shape: bf16[1664,128], index: 2, kind: input, shape index: {}]
  %s3 = inlined_call_operand.vmem [shape: f32[2,1], index: 3, kind: output, shape index: {}]
  %s4 = sld [smem:[#allocation0]]
  $region34: #{tpu_custom_call.1} parent=0
    _
  %s6 = ssub.s32 1, %s4
  %s7 = scalar_select 0, %s6, %s4
  $region1: #{tpu_custom_call.1} parent=0
    #allocation2 [shape = 'u8[13312]{0}', space=vmem, size = 0x3400, scoped, tag = 'input window, operand 0, single buffered']
    #allocation3 [shape = 's32[1]{0}', space=sflag, size = 0x4, scoped, tag = 'scoped memory for tpu_custom_call.1']
    #allocation4 [shape = 'u8[26624]{0}', space=vmem, size = 0x6800, scoped, tag = 'input window, operand 1, single buffered']
    #allocation5 [shape = 's32[1]{0}', space=sflag, size = 0x4, scoped, tag = 'scoped memory for tpu_custom_call.1']
    #allocation6 [shape = 'u8[425984]{0}', space=vmem, size = 0x68000, scoped, tag = 'input window, operand 2, single buffered']
    %8 = vsyncpa [#allocation3], 0
    %9 = vsyncpa [#allocation5], 0
    // Predicated region
    $region2: #{tpu_custom_call.1} parent=1 // pred_check
      _
    $region3: #{tpu_custom_call.1} parent=1 // pred_check_branch
      %11 = sbr.rel (0) target = $region5
    $region4: #{tpu_custom_call.1} parent=1 // pred_region
      %13 = vsyncadd [#allocation3], 0
      %s15 = sshll.u32 %s0, 4
      %s16 = int_to_ptr.hbm [resolvable:$true] %s15
      %s17 = sshll.u32 [#allocation2], 4
      %s18 = int_to_ptr.vmem [resolvable:$true] %s17
      %20 = dma.hbm_to_vmem [thread:$0]  %s16, 416, %s18, [#allocation3]
    $region5: #{tpu_custom_call.1} parent=1 // pred_fallthru
      _
    // Predicated region
    $region6: #{tpu_custom_call.1} parent=1 // pred_check
      _
    $region7: #{tpu_custom_call.1} parent=1 // pred_check_branch
      %22 = sbr.rel (0) target = $region9
    $region8: #{tpu_custom_call.1} parent=1 // pred_region
      %24 = vsyncadd [#allocation5], 0
      %s26 = sshll.u32 %s1, 4
      %s27 = int_to_ptr.hbm [resolvable:$true] %s26
      %s28 = sshll.u32 [#allocation4], 4
      %s29 = int_to_ptr.vmem [resolvable:$true] %s28
      %31 = dma.hbm_to_vmem [thread:$0]  %s27, 832, %s29, [#allocation5]
    $region9: #{tpu_custom_call.1} parent=1 // pred_fallthru
      _
    // Predicated region
    $region10: #{tpu_custom_call.1} parent=1 // pred_check
      _
    $region11: #{tpu_custom_call.1} parent=1 // pred_check_branch
      %33 = sbr.rel (0) target = $region13
    $region12: #{tpu_custom_call.1} parent=1 // pred_region
      %35 = vsyncadd [#allocation5], 0
      %s36 = sshll.u32 %s2, 4
      %s37 = int_to_ptr.hbm [resolvable:$true] %s36
      %s38 = sshll.u32 [#allocation6], 4
      %s39 = int_to_ptr.vmem [resolvable:$true] %s38
      %44 = dma.hbm_to_vmem [thread:$0]  %s37, 13312, %s39, [#allocation5], 64, 64, 4
    $region13: #{tpu_custom_call.1} parent=1 // pred_fallthru
      _
    // Predicated region
    $region14: #{tpu_custom_call.1} parent=1 // pred_check
      _
    $region15: #{tpu_custom_call.1} parent=1 // pred_check_branch
      %46 = sbr.rel (0) target = $region17
    $region16: #{tpu_custom_call.1} parent=1 // pred_region
      %48 = dma.done [#allocation3], 416
    $region17: #{tpu_custom_call.1} parent=1 // pred_fallthru
      _
    // Predicated region
    $region18: #{tpu_custom_call.1} parent=1 // pred_check
      _
    $region19: #{tpu_custom_call.1} parent=1 // pred_check_branch
      %50 = sbr.rel (0) target = $region21
    $region20: #{tpu_custom_call.1} parent=1 // pred_region
      %52 = dma.done [#allocation5], 832
    $region21: #{tpu_custom_call.1} parent=1 // pred_fallthru
      _
    // Predicated region
    $region22: #{tpu_custom_call.1} parent=1 // pred_check
      _
    $region23: #{tpu_custom_call.1} parent=1 // pred_check_branch
      %54 = sbr.rel (0) target = $region25
    $region24: #{tpu_custom_call.1} parent=1 // pred_region
      %56 = dma.done [#allocation5], 13312
    $region25: #{tpu_custom_call.1} parent=1 // pred_fallthru
      _
    %v57 = vld [vmem:[#allocation2] sm:$0xff]
    %v58 = vld [vmem:[#allocation2 + $0x8] sm:$0xff]
    %v59 = vld [vmem:[#allocation2 + $0x10] sm:$0xff]
    %v60 = vld [vmem:[#allocation2 + $0x18] sm:$0x3]
    %v61 = vld [vmem:[#allocation4] ss:$4 sm:$0xff]
    %s62 = scalar_lea.vmem [#allocation4], 32
    %v63 = vld [vmem:[%s62] ss:$4 sm:$0x1f]
    %v66 = vperm.slane %v61, 0
    %v67 = vperm.slane %v61, 1
    %v68 = vperm.slane %v61, 2
    %v69 = vperm.slane %v61, 3
    %v70 = vperm.slane %v61, 4
    %v71 = vperm.slane %v61, 5
    %v72 = vperm.slane %v61, 6
    %v73 = vperm.slane %v61, 7
    %v74 = vperm.slane %v63, 0
    %v75 = vperm.slane %v63, 1
    %v76 = vperm.slane %v63, 2
    %v77 = vperm.slane %v63, 3
    %v78 = vperm.slane %v63, 4
    %v80 = vrot.slane %v67, 6
    %v81 = vrot.slane %v68, 4
    %v82 = vrot.slane %v69, 2
    %v83 = vrot.slane %v71, 6
    %v84 = vrot.slane %v72, 4
    %v85 = vrot.slane %v73, 2
    %v86 = vrot.slane %v75, 6
    %v87 = vrot.slane %v76, 4
    %v88 = vrot.slane %v77, 2
    %vm89 = vcmask 1041408
    %v90 = vsel %vm89, %v66, %v80
    %vm91 = vcmask 1045508
    %v92 = vsel %vm91, %v81, %v82
    %vm93 = vcmask 1043456
    %v94 = vsel %vm93, %v90, %v92
    %v95 = vsel %vm89, %v70, %v83
    %v96 = vsel %vm91, %v84, %v85
    %v97 = vsel %vm93, %v95, %v96
    %v98 = vsel %vm89, %v74, %v86
    %v99 = vsel %vm91, %v87, %v88
    %v100 = vsel %vm93, %v98, %v99
    %v104 = vmul.f32 %v57, %v94
    %v105 = vmul.f32 %v58, %v97
    %v106 = vmul.f32 %v59, %v100
    %v107 = vmul.f32 %v60, %v78
    %s108 = scalar_lea.vmem [#allocation4], 1
    %v109 = vld [vmem:[%s108] ss:$4 sm:$0xff]
    %s110 = scalar_lea.vmem [#allocation4], 33
    %v111 = vld [vmem:[%s110] ss:$4 sm:$0x1f]
    %v114 = vperm.slane %v109, 0
    %v115 = vperm.slane %v109, 1
    %v116 = vperm.slane %v109, 2
    %v117 = vperm.slane %v109, 3
    %v118 = vperm.slane %v109, 4
    %v119 = vperm.slane %v109, 5
    %v120 = vperm.slane %v109, 6
    %v121 = vperm.slane %v109, 7
    %v122 = vperm.slane %v111, 0
    %v123 = vperm.slane %v111, 1
    %v124 = vperm.slane %v111, 2
    %v125 = vperm.slane %v111, 3
    %v126 = vperm.slane %v111, 4
    %v128 = vrot.slane %v115, 6
    %v129 = vrot.slane %v116, 4
    %v130 = vrot.slane %v117, 2
    %v131 = vrot.slane %v119, 6
    %v132 = vrot.slane %v120, 4
    %v133 = vrot.slane %v121, 2
    %v134 = vrot.slane %v123, 6
    %v135 = vrot.slane %v124, 4
    %v136 = vrot.slane %v125, 2
    %v137 = vsel %vm89, %v114, %v128
    %v138 = vsel %vm91, %v129, %v130
    %v139 = vsel %vm93, %v137, %v138
    %v140 = vsel %vm89, %v118, %v131
    %v141 = vsel %vm91, %v132, %v133
    %v142 = vsel %vm93, %v140, %v141
    %v143 = vsel %vm89, %v122, %v134
    %v144 = vsel %vm91, %v135, %v136
    %v145 = vsel %vm93, %v143, %v144
    %v149 = vadd.f32 %v104, %v139
    %v150 = vadd.f32 %v105, %v142
    %v151 = vadd.f32 %v106, %v145
    %v152 = vadd.f32 %v107, %v126
    %v153 = vmax.f32 %v149, 0.0
    %v154 = vmax.f32 %v150, 0.0
    %v155 = vmax.f32 %v151, 0.0
    %v156 = vmax.f32 %v152, 0.0
    %161 = vst [vmem:[#allocation1] ss:$4 sm:$0xff] %v153
    %s162 = scalar_lea.vmem [#allocation1], 32
    %163 = vst [vmem:[%s162] ss:$4 sm:$0xff] %v154
    %v164 = vld.sshfl [vmem:[#allocation1] sm:$0xff pattern:$0x73625140]
    %v165 = vld.sshfl [vmem:[#allocation1 + $0x8] sm:$0xff pattern:$0x73625140]
    %v166 = vld.sshfl [vmem:[#allocation1 + $0x10] sm:$0xff pattern:$0x73625140]
    %v167 = vld.sshfl [vmem:[#allocation1 + $0x18] sm:$0xff pattern:$0x73625140]
    %v168 = vld.sshfl [vmem:[#allocation1 + $0x20] sm:$0xff pattern:$0x73625140]
    %v169 = vld.sshfl [vmem:[#allocation1 + $0x28] sm:$0xff pattern:$0x73625140]
    %v170 = vld.sshfl [vmem:[#allocation1 + $0x30] sm:$0xff pattern:$0x73625140]
    %v171 = vld.sshfl [vmem:[#allocation1 + $0x38] sm:$0xff pattern:$0x73625140]
    %172 = vst [vmem:[#allocation1] ss:$4 sm:$0xff] %v155
    %173 = vst [vmem:[%s162] ss:$4 sm:$0xff] %v156
    %v174 = vld.sshfl [vmem:[#allocation1] sm:$0xff pattern:$0x73625140]
    %v175 = vld.sshfl [vmem:[#allocation1 + $0x8] sm:$0xff pattern:$0x73625140]
    %v176 = vld.sshfl [vmem:[#allocation1 + $0x10] sm:$0xff pattern:$0x73625140]
    %v177 = vld.sshfl [vmem:[#allocation1 + $0x18] sm:$0xff pattern:$0x73625140]
    %v178 = vld.sshfl [vmem:[#allocation1 + $0x20] sm:$0xff pattern:$0x73625140]
    %v192 = vpack.c.bf16 %v164, %v164
    %v193 = vpack.c.bf16 %v165, %v165
    %v194 = vpack.c.bf16 %v166, %v166
    %v195 = vpack.c.bf16 %v167, %v167
    %v196 = vpack.c.bf16 %v168, %v168
    %v197 = vpack.c.bf16 %v169, %v169
    %v198 = vpack.c.bf16 %v170, %v170
    %v199 = vpack.c.bf16 %v171, %v171
    %v200 = vpack.c.bf16 %v174, %v174
    %v201 = vpack.c.bf16 %v175, %v175
    %v202 = vpack.c.bf16 %v176, %v176
    %v203 = vpack.c.bf16 %v177, %v177
    %v204 = vpack.c.bf16 %v178, %v178
    %v205 = vld [vmem:[#allocation6] sm:$0xf]
    %v206 = vld [vmem:[#allocation6 + $0x4] sm:$0xf]
    %v207 = vld [vmem:[#allocation6 + $0x8] sm:$0xf]
    %v208 = vld [vmem:[#allocation6 + $0xc] sm:$0xf]
    %v209 = vld [vmem:[#allocation6 + $0x10] sm:$0xf]
    %v210 = vld [vmem:[#allocation6 + $0x14] sm:$0xf]
    %v211 = vld [vmem:[#allocation6 + $0x18] sm:$0xf]
    %v212 = vld [vmem:[#allocation6 + $0x1c] sm:$0xf]
    %v213 = vld [vmem:[#allocation6 + $0x20] sm:$0xf]
    %v214 = vld [vmem:[#allocation6 + $0x24] sm:$0xf]
    %v215 = vld [vmem:[#allocation6 + $0x28] sm:$0xf]
    %v216 = vld [vmem:[#allocation6 + $0x2c] sm:$0xf]
    %v217 = vld [vmem:[#allocation6 + $0x30] sm:$0xf]
    %v218 = vld [vmem:[#allocation6 + $0x34] sm:$0xf]
    %v219 = vld [vmem:[#allocation6 + $0x38] sm:$0xf]
    %v220 = vld [vmem:[#allocation6 + $0x3c] sm:$0xf]
    %v221 = vld [vmem:[#allocation6 + $0x40] sm:$0xf]
    %v222 = vld [vmem:[#allocation6 + $0x44] sm:$0xf]
    %v223 = vld [vmem:[#allocation6 + $0x48] sm:$0xf]
    %v224 = vld [vmem:[#allocation6 + $0x4c] sm:$0xf]
    %v225 = vld [vmem:[#allocation6 + $0x50] sm:$0xf]
    %v226 = vld [vmem:[#allocation6 + $0x54] sm:$0xf]
    %v227 = vld [vmem:[#allocation6 + $0x58] sm:$0xf]
    %v228 = vld [vmem:[#allocation6 + $0x5c] sm:$0xf]
    %v229 = vld [vmem:[#allocation6 + $0x60] sm:$0xf]
    %v230 = vld [vmem:[#allocation6 + $0x64] sm:$0xf]
    %v231 = vld [vmem:[#allocation6 + $0x68] sm:$0xf]
    %v232 = vld [vmem:[#allocation6 + $0x6c] sm:$0xf]
    %v233 = vld [vmem:[#allocation6 + $0x70] sm:$0xf]
    %v234 = vld [vmem:[#allocation6 + $0x74] sm:$0xf]
    %v235 = vld [vmem:[#allocation6 + $0x78] sm:$0xf]
    %v236 = vld [vmem:[#allocation6 + $0x7c] sm:$0xf]
    %v237 = vld [vmem:[#allocation6 + $0x80] sm:$0xf]
    %v238 = vld [vmem:[#allocation6 + $0x84] sm:$0xf]
    %v239 = vld [vmem:[#allocation6 + $0x88] sm:$0xf]
    %v240 = vld [vmem:[#allocation6 + $0x8c] sm:$0xf]
    %v241 = vld [vmem:[#allocation6 + $0x90] sm:$0xf]
    %v242 = vld [vmem:[#allocation6 + $0x94] sm:$0xf]
    %v243 = vld [vmem:[#allocation6 + $0x98] sm:$0xf]
    %v244 = vld [vmem:[#allocation6 + $0x9c] sm:$0xf]
    %v245 = vld [vmem:[#allocation6 + $0xa0] sm:$0xf]
    %v246 = vld [vmem:[#allocation6 + $0xa4] sm:$0xf]
    %v247 = vld [vmem:[#allocation6 + $0xa8] sm:$0xf]
    %v248 = vld [vmem:[#allocation6 + $0xac] sm:$0xf]
    %v249 = vld [vmem:[#allocation6 + $0xb0] sm:$0xf]
    %v250 = vld [vmem:[#allocation6 + $0xb4] sm:$0xf]
    %v251 = vld [vmem:[#allocation6 + $0xb8] sm:$0xf]
    %v252 = vld [vmem:[#allocation6 + $0xbc] sm:$0xf]
    %v253 = vld [vmem:[#allocation6 + $0xc0] sm:$0xf]
    %v254 = vld [vmem:[#allocation6 + $0xc4] sm:$0xf]
    %v255 = vld [vmem:[#allocation6 + $0xc8] sm:$0xf]
    %v256 = vld [vmem:[#allocation6 + $0xcc] sm:$0xf]
    %v257 = vld [vmem:[#allocation6 + $0xd0] sm:$0xf]
    %v258 = vld [vmem:[#allocation6 + $0xd4] sm:$0xf]
    %v259 = vld [vmem:[#allocation6 + $0xd8] sm:$0xf]
    %v260 = vld [vmem:[#allocation6 + $0xdc] sm:$0xf]
    %v261 = vld [vmem:[#allocation6 + $0xe0] sm:$0xf]
    %v262 = vld [vmem:[#allocation6 + $0xe4] sm:$0xf]
    %v263 = vld [vmem:[#allocation6 + $0xe8] sm:$0xf]
    %v264 = vld [vmem:[#allocation6 + $0xec] sm:$0xf]
    %v265 = vld [vmem:[#allocation6 + $0xf0] sm:$0xf]
    %v266 = vld [vmem:[#allocation6 + $0xf4] sm:$0xf]
    %v267 = vld [vmem:[#allocation6 + $0xf8] sm:$0xf]
    %v268 = vld [vmem:[#allocation6 + $0xfc] sm:$0xf]
    %v269 = vld [vmem:[#allocation6 + $0x100] sm:$0xf]
    %v270 = vld [vmem:[#allocation6 + $0x104] sm:$0xf]
    %v271 = vld [vmem:[#allocation6 + $0x108] sm:$0xf]
    %v272 = vld [vmem:[#allocation6 + $0x10c] sm:$0xf]
    %v273 = vld [vmem:[#allocation6 + $0x110] sm:$0xf]
    %v274 = vld [vmem:[#allocation6 + $0x114] sm:$0xf]
    %v275 = vld [vmem:[#allocation6 + $0x118] sm:$0xf]
    %v276 = vld [vmem:[#allocation6 + $0x11c] sm:$0xf]
    %v277 = vld [vmem:[#allocation6 + $0x120] sm:$0xf]
    %v278 = vld [vmem:[#allocation6 + $0x124] sm:$0xf]
    %v279 = vld [vmem:[#allocation6 + $0x128] sm:$0xf]
    %v280 = vld [vmem:[#allocation6 + $0x12c] sm:$0xf]
    %v281 = vld [vmem:[#allocation6 + $0x130] sm:$0xf]
    %v282 = vld [vmem:[#allocation6 + $0x134] sm:$0xf]
    %v283 = vld [vmem:[#allocation6 + $0x138] sm:$0xf]
    %v284 = vld [vmem:[#allocation6 + $0x13c] sm:$0xf]
    %v285 = vld [vmem:[#allocation6 + $0x140] sm:$0xf]
    %v286 = vld [vmem:[#allocation6 + $0x144] sm:$0xf]
    %v287 = vld [vmem:[#allocation6 + $0x148] sm:$0xf]
    %v288 = vld [vmem:[#allocation6 + $0x14c] sm:$0xf]
    %v289 = vld [vmem:[#allocation6 + $0x150] sm:$0xf]
    %v290 = vld [vmem:[#allocation6 + $0x154] sm:$0xf]
    %v291 = vld [vmem:[#allocation6 + $0x158] sm:$0xf]
    %v292 = vld [vmem:[#allocation6 + $0x15c] sm:$0xf]
    %v293 = vld [vmem:[#allocation6 + $0x160] sm:$0xf]
    %v294 = vld [vmem:[#allocation6 + $0x164] sm:$0xf]
    %v295 = vld [vmem:[#allocation6 + $0x168] sm:$0xf]
    %v296 = vld [vmem:[#allocation6 + $0x16c] sm:$0xf]
    %v297 = vld [vmem:[#allocation6 + $0x170] sm:$0xf]
    %v298 = vld [vmem:[#allocation6 + $0x174] sm:$0xf]
    %v299 = vld [vmem:[#allocation6 + $0x178] sm:$0xf]
    %v300 = vld [vmem:[#allocation6 + $0x17c] sm:$0xf]
    %v301 = vld [vmem:[#allocation6 + $0x180] sm:$0xf]
    %v302 = vld [vmem:[#allocation6 + $0x184] sm:$0xf]
    %v303 = vld [vmem:[#allocation6 + $0x188] sm:$0xf]
    %v304 = vld [vmem:[#allocation6 + $0x18c] sm:$0xf]
    %v305 = vld [vmem:[#allocation6 + $0x190] sm:$0xf]
    %v306 = vld [vmem:[#allocation6 + $0x194] sm:$0xf]
    %v307 = vld [vmem:[#allocation6 + $0x198] sm:$0xf]
    %v308 = vld [vmem:[#allocation6 + $0x19c] sm:$0xf]
    %v309 = vld [vmem:[#allocation6 + $0x1a0] sm:$0xf]
    %v310 = vld [vmem:[#allocation6 + $0x1a4] sm:$0xf]
    %v311 = vld [vmem:[#allocation6 + $0x1a8] sm:$0xf]
    %v312 = vld [vmem:[#allocation6 + $0x1ac] sm:$0xf]
    %v313 = vld [vmem:[#allocation6 + $0x1b0] sm:$0xf]
    %v314 = vld [vmem:[#allocation6 + $0x1b4] sm:$0xf]
    %v315 = vld [vmem:[#allocation6 + $0x1b8] sm:$0xf]
    %v316 = vld [vmem:[#allocation6 + $0x1bc] sm:$0xf]
    %v317 = vld [vmem:[#allocation6 + $0x1c0] sm:$0xf]
    %v318 = vld [vmem:[#allocation6 + $0x1c4] sm:$0xf]
    %v319 = vld [vmem:[#allocation6 + $0x1c8] sm:$0xf]
    %v320 = vld [vmem:[#allocation6 + $0x1cc] sm:$0xf]
    %v321 = vld [vmem:[#allocation6 + $0x1d0] sm:$0xf]
    %v322 = vld [vmem:[#allocation6 + $0x1d4] sm:$0xf]
    %v323 = vld [vmem:[#allocation6 + $0x1d8] sm:$0xf]
    %v324 = vld [vmem:[#allocation6 + $0x1dc] sm:$0xf]
    %v325 = vld [vmem:[#allocation6 + $0x1e0] sm:$0xf]
    %v326 = vld [vmem:[#allocation6 + $0x1e4] sm:$0xf]
    %v327 = vld [vmem:[#allocation6 + $0x1e8] sm:$0xf]
    %v328 = vld [vmem:[#allocation6 + $0x1ec] sm:$0xf]
    %v329 = vld [vmem:[#allocation6 + $0x1f0] sm:$0xf]
    %v330 = vld [vmem:[#allocation6 + $0x1f4] sm:$0xf]
    %v331 = vld [vmem:[#allocation6 + $0x1f8] sm:$0xf]
    %v332 = vld [vmem:[#allocation6 + $0x1fc] sm:$0xf]
    %v333 = vld [vmem:[#allocation6 + $0x200] sm:$0xf]
    %v334 = vld [vmem:[#allocation6 + $0x204] sm:$0xf]
    %v335 = vld [vmem:[#allocation6 + $0x208] sm:$0xf]
    %v336 = vld [vmem:[#allocation6 + $0x20c] sm:$0xf]
    %v337 = vld [vmem:[#allocation6 + $0x210] sm:$0xf]
    %v338 = vld [vmem:[#allocation6 + $0x214] sm:$0xf]
    %v339 = vld [vmem:[#allocation6 + $0x218] sm:$0xf]
    %v340 = vld [vmem:[#allocation6 + $0x21c] sm:$0xf]
    %v341 = vld [vmem:[#allocation6 + $0x220] sm:$0xf]
    %v342 = vld [vmem:[#allocation6 + $0x224] sm:$0xf]
    %v343 = vld [vmem:[#allocation6 + $0x228] sm:$0xf]
    %v344 = vld [vmem:[#allocation6 + $0x22c] sm:$0xf]
    %v345 = vld [vmem:[#allocation6 + $0x230] sm:$0xf]
    %v346 = vld [vmem:[#allocation6 + $0x234] sm:$0xf]
    %v347 = vld [vmem:[#allocation6 + $0x238] sm:$0xf]
    %v348 = vld [vmem:[#allocation6 + $0x23c] sm:$0xf]
    %v349 = vld [vmem:[#allocation6 + $0x240] sm:$0xf]
    %v350 = vld [vmem:[#allocation6 + $0x244] sm:$0xf]
    %v351 = vld [vmem:[#allocation6 + $0x248] sm:$0xf]
    %v352 = vld [vmem:[#allocation6 + $0x24c] sm:$0xf]
    %v353 = vld [vmem:[#allocation6 + $0x250] sm:$0xf]
    %v354 = vld [vmem:[#allocation6 + $0x254] sm:$0xf]
    %v355 = vld [vmem:[#allocation6 + $0x258] sm:$0xf]
    %v356 = vld [vmem:[#allocation6 + $0x25c] sm:$0xf]
    %v357 = vld [vmem:[#allocation6 + $0x260] sm:$0xf]
    %v358 = vld [vmem:[#allocation6 + $0x264] sm:$0xf]
    %v359 = vld [vmem:[#allocation6 + $0x268] sm:$0xf]
    %v360 = vld [vmem:[#allocation6 + $0x26c] sm:$0xf]
    %v361 = vld [vmem:[#allocation6 + $0x270] sm:$0xf]
    %v362 = vld [vmem:[#allocation6 + $0x274] sm:$0xf]
    %v363 = vld [vmem:[#allocation6 + $0x278] sm:$0xf]
    %v364 = vld [vmem:[#allocation6 + $0x27c] sm:$0xf]
    %v365 = vld [vmem:[#allocation6 + $0x280] sm:$0xf]
    %v366 = vld [vmem:[#allocation6 + $0x284] sm:$0xf]
    %v367 = vld [vmem:[#allocation6 + $0x288] sm:$0xf]
    %v368 = vld [vmem:[#allocation6 + $0x28c] sm:$0xf]
    %v369 = vld [vmem:[#allocation6 + $0x290] sm:$0xf]
    %v370 = vld [vmem:[#allocation6 + $0x294] sm:$0xf]
    %v371 = vld [vmem:[#allocation6 + $0x298] sm:$0xf]
    %v372 = vld [vmem:[#allocation6 + $0x29c] sm:$0xf]
    %v373 = vld [vmem:[#allocation6 + $0x2a0] sm:$0xf]
    %v374 = vld [vmem:[#allocation6 + $0x2a4] sm:$0xf]
    %v375 = vld [vmem:[#allocation6 + $0x2a8] sm:$0xf]
    %v376 = vld [vmem:[#allocation6 + $0x2ac] sm:$0xf]
    %v377 = vld [vmem:[#allocation6 + $0x2b0] sm:$0xf]
    %v378 = vld [vmem:[#allocation6 + $0x2b4] sm:$0xf]
    %v379 = vld [vmem:[#allocation6 + $0x2b8] sm:$0xf]
    %v380 = vld [vmem:[#allocation6 + $0x2bc] sm:$0xf]
    %v381 = vld [vmem:[#allocation6 + $0x2c0] sm:$0xf]
    %v382 = vld [vmem:[#allocation6 + $0x2c4] sm:$0xf]
    %v383 = vld [vmem:[#allocation6 + $0x2c8] sm:$0xf]
    %v384 = vld [vmem:[#allocation6 + $0x2cc] sm:$0xf]
    %v385 = vld [vmem:[#allocation6 + $0x2d0] sm:$0xf]
    %v386 = vld [vmem:[#allocation6 + $0x2d4] sm:$0xf]
    %v387 = vld [vmem:[#allocation6 + $0x2d8] sm:$0xf]
    %v388 = vld [vmem:[#allocation6 + $0x2dc] sm:$0xf]
    %v389 = vld [vmem:[#allocation6 + $0x2e0] sm:$0xf]
    %v390 = vld [vmem:[#allocation6 + $0x2e4] sm:$0xf]
    %v391 = vld [vmem:[#allocation6 + $0x2e8] sm:$0xf]
    %v392 = vld [vmem:[#allocation6 + $0x2ec] sm:$0xf]
    %v393 = vld [vmem:[#allocation6 + $0x2f0] sm:$0xf]
    %v394 = vld [vmem:[#allocation6 + $0x2f4] sm:$0xf]
    %v395 = vld [vmem:[#allocation6 + $0x2f8] sm:$0xf]
    %v396 = vld [vmem:[#allocation6 + $0x2fc] sm:$0xf]
    %v397 = vld [vmem:[#allocation6 + $0x300] sm:$0xf]
    %v398 = vld [vmem:[#allocation6 + $0x304] sm:$0xf]
    %v399 = vld [vmem:[#allocation6 + $0x308] sm:$0xf]
    %v400 = vld [vmem:[#allocation6 + $0x30c] sm:$0xf]
    %v401 = vld [vmem:[#allocation6 + $0x310] sm:$0xf]
    %v402 = vld [vmem:[#allocation6 + $0x314] sm:$0xf]
    %v403 = vld [vmem:[#allocation6 + $0x318] sm:$0xf]
    %v404 = vld [vmem:[#allocation6 + $0x31c] sm:$0xf]
    %v405 = vld [vmem:[#allocation6 + $0x320] sm:$0xf]
    %v406 = vld [vmem:[#allocation6 + $0x324] sm:$0xf]
    %v407 = vld [vmem:[#allocation6 + $0x328] sm:$0xf]
    %v408 = vld [vmem:[#allocation6 + $0x32c] sm:$0xf]
    %v409 = vld [vmem:[#allocation6 + $0x330] sm:$0xf]
    %v410 = vld [vmem:[#allocation6 + $0x334] sm:$0xf]
    %v411 = vld [vmem:[#allocation6 + $0x338] sm:$0xf]
    %v412 = vld [vmem:[#allocation6 + $0x33c] sm:$0xf]
    %v413 = vld [vmem:[#allocation4 + $0x2] sm:$0x1]
    %v414 = vperm.slane %v413, 0
    %v623 = vunpack.c.l.b16 %v205
    %v624 = vunpack.c.l.b16 %v206
    %v625 = vunpack.c.l.b16 %v207
    %v626 = vunpack.c.l.b16 %v208
    %v627 = vunpack.c.l.b16 %v209
    %v628 = vunpack.c.l.b16 %v210
    %v629 = vunpack.c.l.b16 %v211
    %v630 = vunpack.c.l.b16 %v212
    %v631 = vunpack.c.l.b16 %v213
    %v632 = vunpack.c.l.b16 %v214
    %v633 = vunpack.c.l.b16 %v215
    %v634 = vunpack.c.l.b16 %v216
    %v635 = vunpack.c.l.b16 %v217
    %v636 = vunpack.c.l.b16 %v218
    %v637 = vunpack.c.l.b16 %v219
    %v638 = vunpack.c.l.b16 %v220
    %v639 = vunpack.c.l.b16 %v221
    %v640 = vunpack.c.l.b16 %v222
    %v641 = vunpack.c.l.b16 %v223
    %v642 = vunpack.c.l.b16 %v224
    %v643 = vunpack.c.l.b16 %v225
    %v644 = vunpack.c.l.b16 %v226
    %v645 = vunpack.c.l.b16 %v227
    %v646 = vunpack.c.l.b16 %v228
    %v647 = vunpack.c.l.b16 %v229
    %v648 = vunpack.c.l.b16 %v230
    %v649 = vunpack.c.l.b16 %v231
    %v650 = vunpack.c.l.b16 %v232
    %v651 = vunpack.c.l.b16 %v233
    %v652 = vunpack.c.l.b16 %v234
    %v653 = vunpack.c.l.b16 %v235
    %v654 = vunpack.c.l.b16 %v236
    %v655 = vunpack.c.l.b16 %v237
    %v656 = vunpack.c.l.b16 %v238
    %v657 = vunpack.c.l.b16 %v239
    %v658 = vunpack.c.l.b16 %v240
    %v659 = vunpack.c.l.b16 %v241
    %v660 = vunpack.c.l.b16 %v242
    %v661 = vunpack.c.l.b16 %v243
    %v662 = vunpack.c.l.b16 %v244
    %v663 = vunpack.c.l.b16 %v245
    %v664 = vunpack.c.l.b16 %v246
    %v665 = vunpack.c.l.b16 %v247
    %v666 = vunpack.c.l.b16 %v248
    %v667 = vunpack.c.l.b16 %v249
    %v668 = vunpack.c.l.b16 %v250
    %v669 = vunpack.c.l.b16 %v251
    %v670 = vunpack.c.l.b16 %v252
    %v671 = vunpack.c.l.b16 %v253
    %v672 = vunpack.c.l.b16 %v254
    %v673 = vunpack.c.l.b16 %v255
    %v674 = vunpack.c.l.b16 %v256
    %v675 = vunpack.c.l.b16 %v257
    %v676 = vunpack.c.l.b16 %v258
    %v677 = vunpack.c.l.b16 %v259
    %v678 = vunpack.c.l.b16 %v260
    %v679 = vunpack.c.l.b16 %v261
    %v680 = vunpack.c.l.b16 %v262
    %v681 = vunpack.c.l.b16 %v263
    %v682 = vunpack.c.l.b16 %v264
    %v683 = vunpack.c.l.b16 %v265
    %v684 = vunpack.c.l.b16 %v266
    %v685 = vunpack.c.l.b16 %v267
    %v686 = vunpack.c.l.b16 %v268
    %v687 = vunpack.c.l.b16 %v269
    %v688 = vunpack.c.l.b16 %v270
    %v689 = vunpack.c.l.b16 %v271
    %v690 = vunpack.c.l.b16 %v272
    %v691 = vunpack.c.l.b16 %v273
    %v692 = vunpack.c.l.b16 %v274
    %v693 = vunpack.c.l.b16 %v275
    %v694 = vunpack.c.l.b16 %v276
    %v695 = vunpack.c.l.b16 %v277
    %v696 = vunpack.c.l.b16 %v278
    %v697 = vunpack.c.l.b16 %v279
    %v698 = vunpack.c.l.b16 %v280
    %v699 = vunpack.c.l.b16 %v281
    %v700 = vunpack.c.l.b16 %v282
    %v701 = vunpack.c.l.b16 %v283
    %v702 = vunpack.c.l.b16 %v284
    %v703 = vunpack.c.l.b16 %v285
    %v704 = vunpack.c.l.b16 %v286
    %v705 = vunpack.c.l.b16 %v287
    %v706 = vunpack.c.l.b16 %v288
    %v707 = vunpack.c.l.b16 %v289
    %v708 = vunpack.c.l.b16 %v290
    %v709 = vunpack.c.l.b16 %v291
    %v710 = vunpack.c.l.b16 %v292
    %v711 = vunpack.c.l.b16 %v293
    %v712 = vunpack.c.l.b16 %v294
    %v713 = vunpack.c.l.b16 %v295
    %v714 = vunpack.c.l.b16 %v296
    %v715 = vunpack.c.l.b16 %v297
    %v716 = vunpack.c.l.b16 %v298
    %v717 = vunpack.c.l.b16 %v299
    %v718 = vunpack.c.l.b16 %v300
    %v719 = vunpack.c.l.b16 %v301
    %v720 = vunpack.c.l.b16 %v302
    %v721 = vunpack.c.l.b16 %v303
    %v722 = vunpack.c.l.b16 %v304
    %v723 = vunpack.c.l.b16 %v305
    %v724 = vunpack.c.l.b16 %v306
    %v725 = vunpack.c.l.b16 %v307
    %v726 = vunpack.c.l.b16 %v308
    %v727 = vunpack.c.l.b16 %v309
    %v728 = vunpack.c.l.b16 %v310
    %v729 = vunpack.c.l.b16 %v311
    %v730 = vunpack.c.l.b16 %v312
    %v731 = vunpack.c.l.b16 %v313
    %v732 = vunpack.c.l.b16 %v314
    %v733 = vunpack.c.l.b16 %v315
    %v734 = vunpack.c.l.b16 %v316
    %v735 = vunpack.c.l.b16 %v317
    %v736 = vunpack.c.l.b16 %v318
    %v737 = vunpack.c.l.b16 %v319
    %v738 = vunpack.c.l.b16 %v320
    %v739 = vunpack.c.l.b16 %v321
    %v740 = vunpack.c.l.b16 %v322
    %v741 = vunpack.c.l.b16 %v323
    %v742 = vunpack.c.l.b16 %v324
    %v743 = vunpack.c.l.b16 %v325
    %v744 = vunpack.c.l.b16 %v326
    %v745 = vunpack.c.l.b16 %v327
    %v746 = vunpack.c.l.b16 %v328
    %v747 = vunpack.c.l.b16 %v329
    %v748 = vunpack.c.l.b16 %v330
    %v749 = vunpack.c.l.b16 %v331
    %v750 = vunpack.c.l.b16 %v332
    %v751 = vunpack.c.l.b16 %v333
    %v752 = vunpack.c.l.b16 %v334
    %v753 = vunpack.c.l.b16 %v335
    %v754 = vunpack.c.l.b16 %v336
    %v755 = vunpack.c.l.b16 %v337
    %v756 = vunpack.c.l.b16 %v338
    %v757 = vunpack.c.l.b16 %v339
    %v758 = vunpack.c.l.b16 %v340
    %v759 = vunpack.c.l.b16 %v341
    %v760 = vunpack.c.l.b16 %v342
    %v761 = vunpack.c.l.b16 %v343
    %v762 = vunpack.c.l.b16 %v344
    %v763 = vunpack.c.l.b16 %v345
    %v764 = vunpack.c.l.b16 %v346
    %v765 = vunpack.c.l.b16 %v347
    %v766 = vunpack.c.l.b16 %v348
    %v767 = vunpack.c.l.b16 %v349
    %v768 = vunpack.c.l.b16 %v350
    %v769 = vunpack.c.l.b16 %v351
    %v770 = vunpack.c.l.b16 %v352
    %v771 = vunpack.c.l.b16 %v353
    %v772 = vunpack.c.l.b16 %v354
    %v773 = vunpack.c.l.b16 %v355
    %v774 = vunpack.c.l.b16 %v356
    %v775 = vunpack.c.l.b16 %v357
    %v776 = vunpack.c.l.b16 %v358
    %v777 = vunpack.c.l.b16 %v359
    %v778 = vunpack.c.l.b16 %v360
    %v779 = vunpack.c.l.b16 %v361
    %v780 = vunpack.c.l.b16 %v362
    %v781 = vunpack.c.l.b16 %v363
    %v782 = vunpack.c.l.b16 %v364
    %v783 = vunpack.c.l.b16 %v365
    %v784 = vunpack.c.l.b16 %v366
    %v785 = vunpack.c.l.b16 %v367
    %v786 = vunpack.c.l.b16 %v368
    %v787 = vunpack.c.l.b16 %v369
    %v788 = vunpack.c.l.b16 %v370
    %v789 = vunpack.c.l.b16 %v371
    %v790 = vunpack.c.l.b16 %v372
    %v791 = vunpack.c.l.b16 %v373
    %v792 = vunpack.c.l.b16 %v374
    %v793 = vunpack.c.l.b16 %v375
    %v794 = vunpack.c.l.b16 %v376
    %v795 = vunpack.c.l.b16 %v377
    %v796 = vunpack.c.l.b16 %v378
    %v797 = vunpack.c.l.b16 %v379
    %v798 = vunpack.c.l.b16 %v380
    %v799 = vunpack.c.l.b16 %v381
    %v800 = vunpack.c.l.b16 %v382
    %v801 = vunpack.c.l.b16 %v383
    %v802 = vunpack.c.l.b16 %v384
    %v803 = vunpack.c.l.b16 %v385
    %v804 = vunpack.c.l.b16 %v386
    %v805 = vunpack.c.l.b16 %v387
    %v806 = vunpack.c.l.b16 %v388
    %v807 = vunpack.c.l.b16 %v389
    %v808 = vunpack.c.l.b16 %v390
    %v809 = vunpack.c.l.b16 %v391
    %v810 = vunpack.c.l.b16 %v392
    %v811 = vunpack.c.l.b16 %v393
    %v812 = vunpack.c.l.b16 %v394
    %v813 = vunpack.c.l.b16 %v395
    %v814 = vunpack.c.l.b16 %v396
    %v815 = vunpack.c.l.b16 %v397
    %v816 = vunpack.c.l.b16 %v398
    %v817 = vunpack.c.l.b16 %v399
    %v818 = vunpack.c.l.b16 %v400
    %v819 = vunpack.c.l.b16 %v401
    %v820 = vunpack.c.l.b16 %v402
    %v821 = vunpack.c.l.b16 %v403
    %v822 = vunpack.c.l.b16 %v404
    %v823 = vunpack.c.l.b16 %v405
    %v824 = vunpack.c.l.b16 %v406
    %v825 = vunpack.c.l.b16 %v407
    %v826 = vunpack.c.l.b16 %v408
    %v827 = vunpack.c.l.b16 %v409
    %v828 = vunpack.c.l.b16 %v410
    %v829 = vunpack.c.l.b16 %v411
    %v830 = vunpack.c.l.b16 %v412
    %v831 = vpack.c.b16 %v624, %v623
    %v832 = vpack.c.b16 %v626, %v625
    %v833 = vpack.c.b16 %v628, %v627
    %v834 = vpack.c.b16 %v630, %v629
    %v835 = vpack.c.b16 %v632, %v631
    %v836 = vpack.c.b16 %v634, %v633
    %v837 = vpack.c.b16 %v636, %v635
    %v838 = vpack.c.b16 %v638, %v637
    %v839 = vpack.c.b16 %v640, %v639
    %v840 = vpack.c.b16 %v642, %v641
    %v841 = vpack.c.b16 %v644, %v643
    %v842 = vpack.c.b16 %v646, %v645
    %v843 = vpack.c.b16 %v648, %v647
    %v844 = vpack.c.b16 %v650, %v649
    %v845 = vpack.c.b16 %v652, %v651
    %v846 = vpack.c.b16 %v654, %v653
    %v847 = vpack.c.b16 %v656, %v655
    %v848 = vpack.c.b16 %v658, %v657
    %v849 = vpack.c.b16 %v660, %v659
    %v850 = vpack.c.b16 %v662, %v661
    %v851 = vpack.c.b16 %v664, %v663
    %v852 = vpack.c.b16 %v666, %v665
    %v853 = vpack.c.b16 %v668, %v667
    %v854 = vpack.c.b16 %v670, %v669
    %v855 = vpack.c.b16 %v672, %v671
    %v856 = vpack.c.b16 %v674, %v673
    %v857 = vpack.c.b16 %v676, %v675
    %v858 = vpack.c.b16 %v678, %v677
    %v859 = vpack.c.b16 %v680, %v679
    %v860 = vpack.c.b16 %v682, %v681
    %v861 = vpack.c.b16 %v684, %v683
    %v862 = vpack.c.b16 %v686, %v685
    %v863 = vpack.c.b16 %v688, %v687
    %v864 = vpack.c.b16 %v690, %v689
    %v865 = vpack.c.b16 %v692, %v691
    %v866 = vpack.c.b16 %v694, %v693
    %v867 = vpack.c.b16 %v696, %v695
    %v868 = vpack.c.b16 %v698, %v697
    %v869 = vpack.c.b16 %v700, %v699
    %v870 = vpack.c.b16 %v702, %v701
    %v871 = vpack.c.b16 %v704, %v703
    %v872 = vpack.c.b16 %v706, %v705
    %v873 = vpack.c.b16 %v708, %v707
    %v874 = vpack.c.b16 %v710, %v709
    %v875 = vpack.c.b16 %v712, %v711
    %v876 = vpack.c.b16 %v714, %v713
    %v877 = vpack.c.b16 %v716, %v715
    %v878 = vpack.c.b16 %v718, %v717
    %v879 = vpack.c.b16 %v720, %v719
    %v880 = vpack.c.b16 %v722, %v721
    %v881 = vpack.c.b16 %v724, %v723
    %v882 = vpack.c.b16 %v726, %v725
    %v883 = vpack.c.b16 %v728, %v727
    %v884 = vpack.c.b16 %v730, %v729
    %v885 = vpack.c.b16 %v732, %v731
    %v886 = vpack.c.b16 %v734, %v733
    %v887 = vpack.c.b16 %v736, %v735
    %v888 = vpack.c.b16 %v738, %v737
    %v889 = vpack.c.b16 %v740, %v739
    %v890 = vpack.c.b16 %v742, %v741
    %v891 = vpack.c.b16 %v744, %v743
    %v892 = vpack.c.b16 %v746, %v745
    %v893 = vpack.c.b16 %v748, %v747
    %v894 = vpack.c.b16 %v750, %v749
    %v895 = vpack.c.b16 %v752, %v751
    %v896 = vpack.c.b16 %v754, %v753
    %v897 = vpack.c.b16 %v756, %v755
    %v898 = vpack.c.b16 %v758, %v757
    %v899 = vpack.c.b16 %v760, %v759
    %v900 = vpack.c.b16 %v762, %v761
    %v901 = vpack.c.b16 %v764, %v763
    %v902 = vpack.c.b16 %v766, %v765
    %v903 = vpack.c.b16 %v768, %v767
    %v904 = vpack.c.b16 %v770, %v769
    %v905 = vpack.c.b16 %v772, %v771
    %v906 = vpack.c.b16 %v774, %v773
    %v907 = vpack.c.b16 %v776, %v775
    %v908 = vpack.c.b16 %v778, %v777
    %v909 = vpack.c.b16 %v780, %v779
    %v910 = vpack.c.b16 %v782, %v781
    %v911 = vpack.c.b16 %v784, %v783
    %v912 = vpack.c.b16 %v786, %v785
    %v913 = vpack.c.b16 %v788, %v787
    %v914 = vpack.c.b16 %v790, %v789
    %v915 = vpack.c.b16 %v792, %v791
    %v916 = vpack.c.b16 %v794, %v793
    %v917 = vpack.c.b16 %v796, %v795
    %v918 = vpack.c.b16 %v798, %v797
    %v919 = vpack.c.b16 %v800, %v799
    %v920 = vpack.c.b16 %v802, %v801
    %v921 = vpack.c.b16 %v804, %v803
    %v922 = vpack.c.b16 %v806, %v805
    %v923 = vpack.c.b16 %v808, %v807
    %v924 = vpack.c.b16 %v810, %v809
    %v925 = vpack.c.b16 %v812, %v811
    %v926 = vpack.c.b16 %v814, %v813
    %v927 = vpack.c.b16 %v816, %v815
    %v928 = vpack.c.b16 %v818, %v817
    %v929 = vpack.c.b16 %v820, %v819
    %v930 = vpack.c.b16 %v822, %v821
    %v931 = vpack.c.b16 %v824, %v823
    %v932 = vpack.c.b16 %v826, %v825
    %v933 = vpack.c.b16 %v828, %v827
    %v934 = vpack.c.b16 %v830, %v829
    %1039 = vmatpush.bf16.msra.mxu0 %v838
    %1040 = vmatpush.bf16.msra.mxu0 %v837
    %1041 = vmatpush.bf16.msra.mxu0 %v836
    %1042 = vmatpush.bf16.msra.mxu0 %v835
    %1043 = vmatpush.bf16.msra.mxu0 %v834
    %1044 = vmatpush.bf16.msra.mxu0 %v833
    %1045 = vmatpush.bf16.msra.mxu0 %v832
    %1046 = vmatpush.bf16.msra.mxu0 %v831
    %1047 = vmatmul.bf16.gmra.mxu0 %v192
    %v1048 = vpop.f32.mrf.mxu0
    %v1049 = vadd.f32 %v414, %v1048
    %v1050 = vpop.f32.mrf.mxu0
    %1051 = vdwg.mxu0
    %1052 = vmatpush.bf16.msra.mxu0 %v846
    %1053 = vmatpush.bf16.msra.mxu0 %v845
    %1054 = vmatpush.bf16.msra.mxu0 %v844
    %1055 = vmatpush.bf16.msra.mxu0 %v843
    %1056 = vmatpush.bf16.msra.mxu0 %v842
    %1057 = vmatpush.bf16.msra.mxu0 %v841
    %1058 = vmatpush.bf16.msra.mxu0 %v840
    %1059 = vmatpush.bf16.msra.mxu0 %v839
    %1060 = vmatmul.bf16.gmra.mxu0 %v193
    %v1061 = vpop.f32.mrf.mxu0
    %v1062 = vadd.f32 %v1049, %v1061
    %v1063 = vpop.f32.mrf.mxu0
    %1064 = vdwg.mxu0
    %1065 = vmatpush.bf16.msra.mxu0 %v854
    %1066 = vmatpush.bf16.msra.mxu0 %v853
    %1067 = vmatpush.bf16.msra.mxu0 %v852
    %1068 = vmatpush.bf16.msra.mxu0 %v851
    %1069 = vmatpush.bf16.msra.mxu0 %v850
    %1070 = vmatpush.bf16.msra.mxu0 %v849
    %1071 = vmatpush.bf16.msra.mxu0 %v848
    %1072 = vmatpush.bf16.msra.mxu0 %v847
    %1073 = vmatmul.bf16.gmra.mxu0 %v194
    %v1074 = vpop.f32.mrf.mxu0
    %v1075 = vadd.f32 %v1062, %v1074
    %v1076 = vpop.f32.mrf.mxu0
    %1077 = vdwg.mxu0
    %1078 = vmatpush.bf16.msra.mxu0 %v862
    %1079 = vmatpush.bf16.msra.mxu0 %v861
    %1080 = vmatpush.bf16.msra.mxu0 %v860
    %1081 = vmatpush.bf16.msra.mxu0 %v859
    %1082 = vmatpush.bf16.msra.mxu0 %v858
    %1083 = vmatpush.bf16.msra.mxu0 %v857
    %1084 = vmatpush.bf16.msra.mxu0 %v856
    %1085 = vmatpush.bf16.msra.mxu0 %v855
    %1086 = vmatmul.bf16.gmra.mxu0 %v195
    %v1087 = vpop.f32.mrf.mxu0
    %v1088 = vadd.f32 %v1075, %v1087
    %v1089 = vpop.f32.mrf.mxu0
    %1090 = vdwg.mxu0
    %1091 = vmatpush.bf16.msra.mxu0 %v870
    %1092 = vmatpush.bf16.msra.mxu0 %v869
    %1093 = vmatpush.bf16.msra.mxu0 %v868
    %1094 = vmatpush.bf16.msra.mxu0 %v867
    %1095 = vmatpush.bf16.msra.mxu0 %v866
    %1096 = vmatpush.bf16.msra.mxu0 %v865
    %1097 = vmatpush.bf16.msra.mxu0 %v864
    %1098 = vmatpush.bf16.msra.mxu0 %v863
    %1099 = vmatmul.bf16.gmra.mxu0 %v196
    %v1100 = vpop.f32.mrf.mxu0
    %v1101 = vadd.f32 %v1088, %v1100
    %v1102 = vpop.f32.mrf.mxu0
    %1103 = vdwg.mxu0
    %1104 = vmatpush.bf16.msra.mxu0 %v878
    %1105 = vmatpush.bf16.msra.mxu0 %v877
    %1106 = vmatpush.bf16.msra.mxu0 %v876
    %1107 = vmatpush.bf16.msra.mxu0 %v875
    %1108 = vmatpush.bf16.msra.mxu0 %v874
    %1109 = vmatpush.bf16.msra.mxu0 %v873
    %1110 = vmatpush.bf16.msra.mxu0 %v872
    %1111 = vmatpush.bf16.msra.mxu0 %v871
    %1112 = vmatmul.bf16.gmra.mxu0 %v197
    %v1113 = vpop.f32.mrf.mxu0
    %v1114 = vadd.f32 %v1101, %v1113
    %v1115 = vpop.f32.mrf.mxu0
    %1116 = vdwg.mxu0
    %1117 = vmatpush.bf16.msra.mxu0 %v886
    %1118 = vmatpush.bf16.msra.mxu0 %v885
    %1119 = vmatpush.bf16.msra.mxu0 %v884
    %1120 = vmatpush.bf16.msra.mxu0 %v883
    %1121 = vmatpush.bf16.msra.mxu0 %v882
    %1122 = vmatpush.bf16.msra.mxu0 %v881
    %1123 = vmatpush.bf16.msra.mxu0 %v880
    %1124 = vmatpush.bf16.msra.mxu0 %v879
    %1125 = vmatmul.bf16.gmra.mxu0 %v198
    %v1126 = vpop.f32.mrf.mxu0
    %v1127 = vadd.f32 %v1114, %v1126
    %v1128 = vpop.f32.mrf.mxu0
    %1129 = vdwg.mxu0
    %1130 = vmatpush.bf16.msra.mxu0 %v894
    %1131 = vmatpush.bf16.msra.mxu0 %v893
    %1132 = vmatpush.bf16.msra.mxu0 %v892
    %1133 = vmatpush.bf16.msra.mxu0 %v891
    %1134 = vmatpush.bf16.msra.mxu0 %v890
    %1135 = vmatpush.bf16.msra.mxu0 %v889
    %1136 = vmatpush.bf16.msra.mxu0 %v888
    %1137 = vmatpush.bf16.msra.mxu0 %v887
    %1138 = vmatmul.bf16.gmra.mxu0 %v199
    %v1139 = vpop.f32.mrf.mxu0
    %v1140 = vadd.f32 %v1127, %v1139
    %v1141 = vpop.f32.mrf.mxu0
    %1142 = vdwg.mxu0
    %1143 = vmatpush.bf16.msra.mxu0 %v902
    %1144 = vmatpush.bf16.msra.mxu0 %v901
    %1145 = vmatpush.bf16.msra.mxu0 %v900
    %1146 = vmatpush.bf16.msra.mxu0 %v899
    %1147 = vmatpush.bf16.msra.mxu0 %v898
    %1148 = vmatpush.bf16.msra.mxu0 %v897
    %1149 = vmatpush.bf16.msra.mxu0 %v896
    %1150 = vmatpush.bf16.msra.mxu0 %v895
    %1151 = vmatmul.bf16.gmra.mxu0 %v200
    %v1152 = vpop.f32.mrf.mxu0
    %v1153 = vadd.f32 %v1140, %v1152
    %v1154 = vpop.f32.mrf.mxu0
    %1155 = vdwg.mxu0
    %1156 = vmatpush.bf16.msra.mxu0 %v910
    %1157 = vmatpush.bf16.msra.mxu0 %v909
    %1158 = vmatpush.bf16.msra.mxu0 %v908
    %1159 = vmatpush.bf16.msra.mxu0 %v907
    %1160 = vmatpush.bf16.msra.mxu0 %v906
    %1161 = vmatpush.bf16.msra.mxu0 %v905
    %1162 = vmatpush.bf16.msra.mxu0 %v904
    %1163 = vmatpush.bf16.msra.mxu0 %v903
    %1164 = vmatmul.bf16.gmra.mxu0 %v201
    %v1165 = vpop.f32.mrf.mxu0
    %v1166 = vadd.f32 %v1153, %v1165
    %v1167 = vpop.f32.mrf.mxu0
    %1168 = vdwg.mxu0
    %1169 = vmatpush.bf16.msra.mxu0 %v918
    %1170 = vmatpush.bf16.msra.mxu0 %v917
    %1171 = vmatpush.bf16.msra.mxu0 %v916
    %1172 = vmatpush.bf16.msra.mxu0 %v915
    %1173 = vmatpush.bf16.msra.mxu0 %v914
    %1174 = vmatpush.bf16.msra.mxu0 %v913
    %1175 = vmatpush.bf16.msra.mxu0 %v912
    %1176 = vmatpush.bf16.msra.mxu0 %v911
    %1177 = vmatmul.bf16.gmra.mxu0 %v202
    %v1178 = vpop.f32.mrf.mxu0
    %v1179 = vadd.f32 %v1166, %v1178
    %v1180 = vpop.f32.mrf.mxu0
    %1181 = vdwg.mxu0
    %1182 = vmatpush.bf16.msra.mxu0 %v926
    %1183 = vmatpush.bf16.msra.mxu0 %v925
    %1184 = vmatpush.bf16.msra.mxu0 %v924
    %1185 = vmatpush.bf16.msra.mxu0 %v923
    %1186 = vmatpush.bf16.msra.mxu0 %v922
    %1187 = vmatpush.bf16.msra.mxu0 %v921
    %1188 = vmatpush.bf16.msra.mxu0 %v920
    %1189 = vmatpush.bf16.msra.mxu0 %v919
    %1190 = vmatmul.bf16.gmra.mxu0 %v203
    %v1191 = vpop.f32.mrf.mxu0
    %v1192 = vadd.f32 %v1179, %v1191
    %v1193 = vpop.f32.mrf.mxu0
    %1194 = vdwg.mxu0
    %1195 = vmatpush.bf16.msra.mxu0 %v934
    %1196 = vmatpush.bf16.msra.mxu0 %v933
    %1197 = vmatpush.bf16.msra.mxu0 %v932
    %1198 = vmatpush.bf16.msra.mxu0 %v931
    %1199 = vmatpush.bf16.msra.mxu0 %v930
    %1200 = vmatpush.bf16.msra.mxu0 %v929
    %1201 = vmatpush.bf16.msra.mxu0 %v928
    %1202 = vmatpush.bf16.msra.mxu0 %v927
    %1203 = vmatmul.bf16.gmra.mxu0 %v204
    %v1204 = vpop.f32.mrf.mxu0
    %v1205 = vadd.f32 %v1192, %v1204
    %v1206 = vpop.f32.mrf.mxu0
    %1207 = vdwg.mxu0
    %v1208 = vmax.f32 %v1205, 0.0
    %v1209 = vld [vmem:[#allocation4 + $0x6] sm:$0x1]
    %v1210 = vperm.slane %v1209, 0
    %v1211 = vmul.f32 %v1208, %v1210
    %v1212 = vsel %vm89, %v1211, 0.0
    %1213 = vadd.xlane.f32.xlu0 %v1212
    %v1214 = vpop.xlane.xlu0 %1213
    %v1215 = vld [vmem:[#allocation4 + $0xa] sm:$0x1]
    %v1216 = vperm.slane %v1215, 0
    %v1217 = vadd.f32 %v1214, %v1216
    %vm1218 = vcmask 1024
    %1219 = vst.msk [vmem:[%s3] sm:$0x3] %vm1218, %v1217
    // Predicated region
    $region26: #{tpu_custom_call.1} parent=1 // pred_check
      _
    $region27: #{tpu_custom_call.1} parent=1 // pred_check_branch
      %1221 = sbr.rel (0) target = $region29
    $region28: #{tpu_custom_call.1} parent=1 // pred_region
      _
    $region29: #{tpu_custom_call.1} parent=1 // pred_fallthru
      _
    // Predicated region
    $region30: #{tpu_custom_call.1} parent=1 // pred_check
      _
    $region31: #{tpu_custom_call.1} parent=1 // pred_check_branch
      %1223 = sbr.rel (0) target = $region33
    $region32: #{tpu_custom_call.1} parent=1 // pred_region
      _
    $region33: #{tpu_custom_call.1} parent=1 // pred_fallthru
      _
    %1224 = vsyncpa [#allocation3], 1
    %1225 = vsyncpa [#allocation5], 1

</llo_original>
